<compile_context>
chip_gen: v7x
topology: tpu7x:2x2x1
jax: 0.10.0
libtpu: 0.0.40
codegen_flags: <defaults>
</compile_context>

<pallas_src>
import math
from functools import partial

import jax
import jax.numpy as jnp
from jax.experimental import pallas as pl
from jax.experimental.pallas import tpu as pltpu


def _round_up(x, m):
    return (x + m - 1) // m * m


# ---------------------------------------------------------------------------
# Pallas kernel: patch projection  out = A @ Wt + b
#   A    : (tm, K)    patches tile, K = C*kh*kw
#   Wt   : (K, Np)    transposed conv weight, Np = round_up(embed_dims, 128)
#   b    : (1, Np)    f32 bias (pre-cast/padded in the wrapper)
#   out  : (tm, Np)
# ---------------------------------------------------------------------------
def _patch_proj_kernel(a_ref, w_ref, b_ref, o_ref, *, compute_dtype):
    a = a_ref[...]
    w = w_ref[...]
    if compute_dtype is not None:
        # bf16 MXU path for v6e/v7x; accumulate stays f32.
        a = a.astype(compute_dtype)
        w = w.astype(compute_dtype)
    acc = jnp.dot(a, w, preferred_element_type=jnp.float32)
    acc = acc + b_ref[...]  # bias already f32 -> f32 VPU add (v5e-safe)
    o_ref[...] = acc.astype(o_ref.dtype)


def patch_projection(a, w_t, bias_f32, *, tm=256, compute_dtype=None,
                     out_dtype=None):
    """out = a @ w_t + bias.

    a: (M, K), w_t: (K, N), bias_f32: (N,) float32.  Returns (M, N)."""
    M, K = a.shape
    Kw, N = w_t.shape
    assert K == Kw
    out_dtype = out_dtype or a.dtype

    # Lane-dense output: pad embed dim to a multiple of 128.
    N_pad = _round_up(N, 128)
    if N_pad != N:
        w_t = jnp.pad(w_t, ((0, 0), (0, N_pad - N)))
        bias_f32 = jnp.pad(bias_f32, (0, N_pad - N))
    bias2d = bias_f32.astype(jnp.float32).reshape(1, N_pad)

    # Row tiling: big MXU-friendly tiles; zero-pad M so the grid divides
    # evenly (tail rows handled by padding + final slice, never dropped).
    M8 = _round_up(M, 8)
    tm_eff = min(tm, M8)
    tm_eff = _round_up(tm_eff, 8)
    M_pad = _round_up(M8, tm_eff)
    if M_pad != M:
        a = jnp.pad(a, ((0, M_pad - M), (0, 0)))

    grid = (M_pad // tm_eff,)

    # VMEM budget: double-buffered A/out tiles + resident Wt/bias (also
    # conservatively counted as double-buffered).  Raise the scoped limit
    # only when the default 32 MiB is not enough; cap for v7x (64 MiB/TC).
    itemsize = jnp.dtype(a.dtype).itemsize
    vmem_est = (2 * tm_eff * (K + N_pad) * itemsize
                + 2 * (K * N_pad + N_pad) * itemsize)
    vmem_limit = int(min(max(2 * vmem_est, 32 * 2**20), 64 * 2**20))

    out = pl.pallas_call(
        partial(_patch_proj_kernel, compute_dtype=compute_dtype),
        out_shape=jax.ShapeDtypeStruct((M_pad, N_pad), out_dtype),
        grid_spec=pltpu.PrefetchScalarGridSpec(
            num_scalar_prefetch=0,
            grid=grid,
            in_specs=[
                pl.BlockSpec((tm_eff, K), lambda i: (i, 0)),
                pl.BlockSpec((K, N_pad), lambda i: (0, 0)),   # resident weight
                pl.BlockSpec((1, N_pad), lambda i: (0, 0)),   # resident bias
            ],
            out_specs=pl.BlockSpec((tm_eff, N_pad), lambda i: (i, 0)),
        ),
        compiler_params=pltpu.CompilerParams(
            dimension_semantics=("parallel",),   # M tiles shard across TCs (v7x)
            vmem_limit_bytes=vmem_limit,
        ),
    )(a, w_t, bias2d)

    return out[:M, :N]


# ---------------------------------------------------------------------------
# PatchEmbed wrapper: AdaptivePadding("corner") + patch extraction in JAX,
# projection matmul + bias in Pallas.  Matches PatchEmbed.forward with
# norm_cfg=None: returns (B, out_h*out_w, E) and (out_h, out_w).
# ---------------------------------------------------------------------------
def _corner_pad_shape(h, w, kh, kw, sh, sw, dil=1):
    out_h = math.ceil(h / sh)
    out_w = math.ceil(w / sw)
    pad_h = max((out_h - 1) * sh + (kh - 1) * dil + 1 - h, 0)
    pad_w = max((out_w - 1) * sw + (kw - 1) * dil + 1 - w, 0)
    return pad_h, pad_w


def patch_embed_forward(x, weight, bias, *, kernel_size, stride,
                        tm=256, compute_dtype=None):
    """x: (B, C, H, W); weight: (E, C, kh, kw); bias: (E,)."""
    B, C, H, W = x.shape
    E = weight.shape[0]
    kh, kw = kernel_size
    sh, sw = stride
    assert (kh, kw) == (sh, sw), "PatchEmbed uses non-overlapping patches here"

    # AdaptivePadding, mode="corner": zero-pad bottom/right.
    pad_h, pad_w = _corner_pad_shape(H, W, kh, kw, sh, sw)
    if pad_h > 0 or pad_w > 0:
        x = jnp.pad(x, ((0, 0), (0, 0), (0, pad_h), (0, pad_w)))
    Hp, Wp = H + pad_h, W + pad_w
    out_h, out_w = Hp // sh, Wp // sw

    # im2col with inner (C, kh, kw) ordering to match Conv2d weight layout.
    # TODO(synk): fuse this patch extraction into the Pallas kernel (grid over
    # (B, out_h tiles) with the gather done on the VMEM x-tile) to remove the
    # A round trip through HBM; kept in XLA here for lowering robustness.
    patches = x.reshape(B, C, out_h, kh, out_w, kw)
    patches = jnp.transpose(patches, (0, 2, 4, 1, 3, 5))
    A = patches.reshape(B * out_h * out_w, C * kh * kw)

    Wt = weight.reshape(E, C * kh * kw).T

    out = patch_projection(A, Wt, bias.astype(jnp.float32),
                           tm=tm, compute_dtype=compute_dtype,
                           out_dtype=x.dtype)
    out = out.reshape(B, out_h * out_w, E)
    # norm_cfg=None in this configuration -> no norm layer.
    return out, (out_h, out_w)


if __name__ == "__main__":
    # Small config: in_channels=4, embed_dims=32, kernel_size=stride=4,
    # input (B=2, C=4, H=16, W=16) -> out (2, 16, 32), out_size=(4, 4).
    key = jax.random.PRNGKey(0)
    kx, kw_, kb = jax.random.split(key, 3)

    B, C, H, W = 2, 4, 16, 16
    E, K = 32, 4

    x = jax.random.normal(kx, (B, C, H, W), dtype=jnp.float32)
    # Deterministic synthetic parameters (shapes match nn.Conv2d(C, E, K, K)).
    fan_in = C * K * K
    bound = 1.0 / math.sqrt(fan_in)
    weight = jax.random.uniform(kw_, (E, C, K, K), jnp.float32, -bound, bound)
    bias = jax.random.uniform(kb, (E,), jnp.float32, -bound, bound)

    out, out_size = patch_embed_forward(
        x, weight, bias, kernel_size=(K, K), stride=(K, K)
    )
    out = jax.block_until_ready(out)

    # Reference check with plain JAX (strided conv == patch matmul).
    ref = jax.lax.conv_general_dilated(
        x, weight, window_strides=(K, K), padding="VALID",
        dimension_numbers=("NCHW", "OIHW", "NCHW"),
    ) + bias[None, :, None, None]
    ref = ref.reshape(B, E, -1).transpose(0, 2, 1)

    assert out.shape == (B, (H // K) * (W // K), E), out.shape
    assert out_size == (H // K, W // K), out_size
    assert jnp.allclose(out, ref, atol=1e-4, rtol=1e-4)

    print("KERNEL_OK")
</pallas_src>

<mosaic_0001>
module attributes {stable_mosaic.version = 11 : i64} {
  func.func @_patch_proj_kernel(%arg0: i32, %arg1: memref<32x64xf32, #tpu.memory_space<vmem>>, %arg2: memref<64x128xf32, #tpu.memory_space<vmem>>, %arg3: memref<1x128xf32, #tpu.memory_space<vmem>>, %arg4: memref<32x128xf32, #tpu.memory_space<vmem>>) attributes {dimension_semantics = [#tpu.dimension_semantics<parallel>], iteration_bounds = array<i64: 1>, scalar_prefetch = 0 : i64, scratch_operands = 0 : i64, tpu.core_type = #tpu.core_type<tc>, window_params = [{transform_indices = @transform_0, window_bounds = array<i64: 32, 64>}, {pipeline_mode = #tpu.pipeline_mode<synchronous>, transform_indices = @transform_1, window_bounds = array<i64: 64, 128>}, {pipeline_mode = #tpu.pipeline_mode<synchronous>, transform_indices = @transform_2, window_bounds = array<i64: 1, 128>}, {transform_indices = @transform_3, window_bounds = array<i64: 32, 128>}]} {
    %c0 = arith.constant 0 : index
    %c0_0 = arith.constant 0 : index
    %0 = vector.load %arg1[%c0, %c0_0] : memref<32x64xf32, #tpu.memory_space<vmem>>, vector<32x64xf32>
    %c0_1 = arith.constant 0 : index
    %c0_2 = arith.constant 0 : index
    %1 = vector.load %arg2[%c0_1, %c0_2] : memref<64x128xf32, #tpu.memory_space<vmem>>, vector<64x128xf32>
    %cst = arith.constant dense<0.000000e+00> : vector<32x128xf32>
    %2 = tpu.matmul %0, %1, %cst {dimension_numbers = #tpu.dot_dimension_numbers<[1], [0], [0], [1], [0, 0, 1, 1], [], []>} : vector<32x64xf32>, vector<64x128xf32>, vector<32x128xf32> -> vector<32x128xf32>
    %c0_3 = arith.constant 0 : index
    %c0_4 = arith.constant 0 : index
    %3 = vector.load %arg3[%c0_3, %c0_4] : memref<1x128xf32, #tpu.memory_space<vmem>>, vector<1x128xf32>
    %4 = vector.broadcast %3 : vector<1x128xf32> to vector<32x128xf32>
    %5 = arith.addf %2, %4 : vector<32x128xf32>
    %c0_5 = arith.constant 0 : index
    %c0_6 = arith.constant 0 : index
    %6 = vector.load %arg4[%c0_5, %c0_6] : memref<32x128xf32, #tpu.memory_space<vmem>>, vector<32x128xf32>
    tpu.vector_store %arg4[%c0_5, %c0_6], %5 {strides = array<i32>} : memref<32x128xf32, #tpu.memory_space<vmem>>, vector<32x128xf32>,
    return
  }
  func.func @transform_0(%arg0: i32) -> (i32, i32) {
    %c0_i32 = arith.constant 0 : i32
    %c0_i32_0 = arith.constant 0 : i32
    return %arg0, %c0_i32 : i32, i32
  }
  func.func @transform_1(%arg0: i32) -> (i32, i32) {
    %c0_i32 = arith.constant 0 : i32
    %c0_i32_0 = arith.constant 0 : i32
    %c0_i32_1 = arith.constant 0 : i32
    return %c0_i32, %c0_i32_0 : i32, i32
  }
  func.func @transform_2(%arg0: i32) -> (i32, i32) {
    %c0_i32 = arith.constant 0 : i32
    %c0_i32_0 = arith.constant 0 : i32
    %c0_i32_1 = arith.constant 0 : i32
    return %c0_i32, %c0_i32_0 : i32, i32
  }
  func.func @transform_3(%arg0: i32) -> (i32, i32) {
    %c0_i32 = arith.constant 0 : i32
    %c0_i32_0 = arith.constant 0 : i32
    return %arg0, %c0_i32 : i32, i32
  }
}

</mosaic_0001>

<llo_original>
// kernel: tpu_custom_call.1
$region0: #{tpu_custom_call.1}
  #allocation0 [shape = 'u32[]', space=smem, size = 0x4, offset = 0x4, fixed_abs, tag = 'smem constant byte address 0x4 - core index']
  #allocation1 [shape = 'u32[144,128]{1,0:T(1,128)}', space=vmem, size = 0x12000, scoped, tag = 'internal scratch']
  %s0 = inlined_call_operand.hbm [shape: f32[32,64], index: 0, kind: input, shape index: {}]
  %s1 = inlined_call_operand.hbm [shape: f32[64,128], index: 1, kind: input, shape index: {}]
  %s2 = inlined_call_operand.vmem [shape: f32[1,128], index: 2, kind: input, shape index: {}]
  %s3 = inlined_call_operand.hbm [shape: f32[32,128], index: 3, kind: output, shape index: {}]
  %s4 = sld [smem:[#allocation0]]
  $region30: #{tpu_custom_call.1} parent=0
    _
  %s6 = ssub.s32 1, %s4
  %s7 = scalar_select 0, %s6, %s4
  $region1: #{tpu_custom_call.1} parent=0
    #allocation2 [shape = 'u8[16384]{0}', space=vmem, size = 0x4000, scoped, tag = 'input window, operand 0, single buffered']
    #allocation3 [shape = 's32[1]{0}', space=sflag, size = 0x4, scoped, tag = 'scoped memory for tpu_custom_call.1']
    #allocation4 [shape = 's32[1]{0}', space=sflag, size = 0x4, scoped, tag = 'scoped memory for tpu_custom_call.1']
    #allocation5 [shape = 'u8[32768]{0}', space=vmem, size = 0x8000, scoped, tag = 'input window, operand 1, single buffered']
    #allocation6 [shape = 's32[1]{0}', space=sflag, size = 0x4, scoped, tag = 'scoped memory for tpu_custom_call.1']
    #allocation7 [shape = 'u8[16384]{0}', space=vmem, size = 0x4000, scoped, tag = 'output window, operand 0, single buffered']
    %8 = vsyncpa [#allocation3], 0
    %9 = vsyncpa [#allocation6], 0
    %10 = vsyncpa [#allocation4], 0
    // Predicated region
    $region2: #{tpu_custom_call.1} parent=1 // pred_check
      _
    $region3: #{tpu_custom_call.1} parent=1 // pred_check_branch
      %12 = sbr.rel (0) target = $region5
    $region4: #{tpu_custom_call.1} parent=1 // pred_region
      %s14 = ssub.s32 512, 512
      %15 = vsyncadd [#allocation3], %s14
      %s16 = sshll.u32 [#allocation2], 4
      %s17 = int_to_ptr.vmem [resolvable:$true] %s16
      %22 = dma.hbm_to_vmem [thread:$0]  %s0, 512, %s17, [#allocation3], 128, 128, 8
    $region5: #{tpu_custom_call.1} parent=1 // pred_fallthru
      _
    // Predicated region
    $region6: #{tpu_custom_call.1} parent=1 // pred_check
      _
    $region7: #{tpu_custom_call.1} parent=1 // pred_check_branch
      %24 = sbr.rel (0) target = $region9
    $region8: #{tpu_custom_call.1} parent=1 // pred_region
      %s26 = ssub.s32 1024, 1024
      %27 = vsyncadd [#allocation6], %s26
      %s28 = sshll.u32 [#allocation5], 4
      %s29 = int_to_ptr.vmem [resolvable:$true] %s28
      %34 = dma.hbm_to_vmem [thread:$0]  %s1, 1024, %s29, [#allocation6], 128, 128, 8
    $region9: #{tpu_custom_call.1} parent=1 // pred_fallthru
      _
    // Predicated region
    $region10: #{tpu_custom_call.1} parent=1 // pred_check
      _
    $region11: #{tpu_custom_call.1} parent=1 // pred_check_branch
      %36 = sbr.rel (0) target = $region13
    $region12: #{tpu_custom_call.1} parent=1 // pred_region
      _
    $region13: #{tpu_custom_call.1} parent=1 // pred_fallthru
      _
    // Predicated region
    $region14: #{tpu_custom_call.1} parent=1 // pred_check
      _
    $region15: #{tpu_custom_call.1} parent=1 // pred_check_branch
      %38 = sbr.rel (0) target = $region17
    $region16: #{tpu_custom_call.1} parent=1 // pred_region
      %39 = dma.done [#allocation3], 512
    $region17: #{tpu_custom_call.1} parent=1 // pred_fallthru
      _
    // Predicated region
    $region18: #{tpu_custom_call.1} parent=1 // pred_check
      _
    $region19: #{tpu_custom_call.1} parent=1 // pred_check_branch
      %41 = sbr.rel (0) target = $region21
    $region20: #{tpu_custom_call.1} parent=1 // pred_region
      %42 = dma.done [#allocation6], 1024
    $region21: #{tpu_custom_call.1} parent=1 // pred_fallthru
      _
    %v43 = vld [vmem:[#allocation2] sm:$0xff]
    %v44 = vld [vmem:[#allocation2 + $0x8] sm:$0xff]
    %v45 = vld [vmem:[#allocation2 + $0x10] sm:$0xff]
    %v46 = vld [vmem:[#allocation2 + $0x18] sm:$0xff]
    %v47 = vld [vmem:[#allocation5] sm:$0xff]
    %v48 = vld [vmem:[#allocation5 + $0x8] sm:$0xff]
    %v49 = vld [vmem:[#allocation5 + $0x10] sm:$0xff]
    %v50 = vld [vmem:[#allocation5 + $0x18] sm:$0xff]
    %v51 = vld [vmem:[#allocation5 + $0x20] sm:$0xff]
    %v52 = vld [vmem:[#allocation5 + $0x28] sm:$0xff]
    %v53 = vld [vmem:[#allocation5 + $0x30] sm:$0xff]
    %v54 = vld [vmem:[#allocation5 + $0x38] sm:$0xff]
    %v55 = vld [vmem:[%s2] sm:$0x1]
    %v57 = vlaneseq
    %v58 = vshrl.u32 %v57, 7
    %v59 = vsub.s32 0, %v58
    %v60 = vrot.slane %v55, %v59
    %vm62 = vcmask 523264
    %v64 = vsel %vm62, %v43, 0
    %v67 = vsel %vm62, %v44, 0
    %v70 = vsel %vm62, %v45, 0
    %v73 = vsel %vm62, %v46, 0
    %75 = vmatprep.subr.mxu0 0.0
    %76 = vmatpush1.msra.mxu0 %v47
    %77 = vmatprep.subr.mxu0 0.0
    %78 = vmatpush1.msra.mxu0 %v48
    %79 = vmatprep.subr.mxu0 0.0
    %80 = vmatpush1.msra.mxu0 %v49
    %81 = vmatprep.subr.mxu0 0.0
    %82 = vmatpush1.msra.mxu0 %v50
    %83 = vmatprep.subr.mxu0 0.0
    %84 = vmatpush1.msra.mxu0 %v51
    %85 = vmatprep.subr.mxu0 0.0
    %86 = vmatpush1.msra.mxu0 %v52
    %87 = vmatprep.subr.mxu0 0.0
    %88 = vmatpush1.msra.mxu0 %v53
    %89 = vmatprep.subr.mxu0 0.0
    %90 = vmatpush1.msra.mxu0 %v54
    %91 = vmatprep.subr.mxu0 0.0
    %92 = vmatpush1.msra.mxu0 0.0
    %93 = vmatprep.subr.mxu0 0.0
    %94 = vmatpush1.msra.mxu0 0.0
    %95 = vmatprep.subr.mxu0 0.0
    %96 = vmatpush1.msra.mxu0 0.0
    %97 = vmatprep.subr.mxu0 0.0
    %98 = vmatpush1.msra.mxu0 0.0
    %99 = vmatprep.subr.mxu0 0.0
    %100 = vmatpush1.msra.mxu0 0.0
    %101 = vmatprep.subr.mxu0 0.0
    %102 = vmatpush1.msra.mxu0 0.0
    %103 = vmatprep.subr.mxu0 0.0
    %104 = vmatpush1.msra.mxu0 0.0
    %105 = vmatprep.subr.mxu0 0.0
    %106 = vmatpush1.msra.mxu0 0.0
    %107 = vmatprep.subr.mxu0 0.0
    %108 = vmatpush1.msra.mxu0 0.0
    %109 = vmatprep.subr.mxu0 0.0
    %110 = vmatpush1.msra.mxu0 0.0
    %111 = vmatprep.subr.mxu0 0.0
    %112 = vmatpush1.msra.mxu0 0.0
    %113 = vmatprep.subr.mxu0 0.0
    %114 = vmatpush1.msra.mxu0 0.0
    %115 = vmatprep.subr.mxu0 0.0
    %116 = vmatpush1.msra.mxu0 0.0
    %117 = vmatprep.subr.mxu0 0.0
    %118 = vmatpush1.msra.mxu0 0.0
    %119 = vmatprep.subr.mxu0 0.0
    %120 = vmatpush1.msra.mxu0 0.0
    %121 = vmatprep.subr.mxu0 0.0
    %122 = vmatpush1.msra.mxu0 0.0
    %123 = vmatprep.subr.mxu0 0.0
    %124 = vmatpush1.msra.mxu0 0.0
    %125 = vmatprep.subr.mxu0 0.0
    %126 = vmatpush1.msra.mxu0 0.0
    %127 = vmatprep.subr.mxu0 0.0
    %128 = vmatpush1.msra.mxu0 0.0
    %129 = vmatprep.subr.mxu0 0.0
    %130 = vmatpush1.msra.mxu0 0.0
    %131 = vmatprep.subr.mxu0 0.0
    %132 = vmatpush1.msra.mxu0 0.0
    %133 = vmatprep.subr.mxu0 0.0
    %134 = vmatpush1.msra.mxu0 0.0
    %135 = vmatprep.subr.mxu0 0.0
    %136 = vmatpush1.msra.mxu0 0.0
    %137 = vmatprep.subr.mxu0 0.0
    %138 = vmatpush1.msra.mxu0 0.0
    %139 = vmatprep.mubr.f32.mxu0 0.0
    %140 = vmatmul.mubr.f32.gmra.mrb[0].mxu0 %v64
    %v141 = vpop.f32.mrb[0].mxu0
    %v142 = vadd.f32 %v60, %v141
    %v143 = vpop.f32.mrb[0].mxu0
    %144 = vmatprep.mubr.f32.mxu0 0.0
    %145 = vmatmul.mubr.f32.gmra.mrb[0].mxu0 %v67
    %v146 = vpop.f32.mrb[0].mxu0
    %v147 = vadd.f32 %v60, %v146
    %v148 = vpop.f32.mrb[0].mxu0
    %149 = vmatprep.mubr.f32.mxu0 0.0
    %150 = vmatmul.mubr.f32.gmra.mrb[0].mxu0 %v70
    %v151 = vpop.f32.mrb[0].mxu0
    %v152 = vadd.f32 %v60, %v151
    %v153 = vpop.f32.mrb[0].mxu0
    %154 = vmatprep.mubr.f32.mxu0 0.0
    %155 = vmatmul.mubr.f32.gmra.mrb[0].mxu0 %v73
    %v156 = vpop.f32.mrb[0].mxu0
    %v157 = vadd.f32 %v60, %v156
    %v158 = vpop.f32.mrb[0].mxu0
    %159 = vdwg.mxu0
    %160 = vst [vmem:[#allocation7] sm:$0xff] %v142
    %161 = vst [vmem:[#allocation7 + $0x8] sm:$0xff] %v147
    %162 = vst [vmem:[#allocation7 + $0x10] sm:$0xff] %v152
    %163 = vst [vmem:[#allocation7 + $0x18] sm:$0xff] %v157
    // Predicated region
    $region22: #{tpu_custom_call.1} parent=1 // pred_check
      _
    $region23: #{tpu_custom_call.1} parent=1 // pred_check_branch
      %165 = sbr.rel (0) target = $region25
    $region24: #{tpu_custom_call.1} parent=1 // pred_region
      %s167 = ssub.s32 512, 512
      %168 = vsyncadd [#allocation4], %s167
      %s169 = sshll.u32 [#allocation7], 4
      %s170 = int_to_ptr.vmem [resolvable:$true] %s169
      %175 = dma.vmem_to_hbm [thread:$0]  %s170, 512, %s3, [#allocation4], 128, 128, 8
    $region25: #{tpu_custom_call.1} parent=1 // pred_fallthru
      _
    // Predicated region
    $region26: #{tpu_custom_call.1} parent=1 // pred_check
      _
    $region27: #{tpu_custom_call.1} parent=1 // pred_check_branch
      %177 = sbr.rel (0) target = $region29
    $region28: #{tpu_custom_call.1} parent=1 // pred_region
      %178 = dma.done [#allocation4], 512
    $region29: #{tpu_custom_call.1} parent=1 // pred_fallthru
      _
    %179 = vsyncpa [#allocation3], 1
    %180 = vsyncpa [#allocation6], 1
    %181 = vsyncpa [#allocation4], 1

</llo_original>
